<compile_context>
chip_gen: v5e
topology: v5e:2x2
jax: 0.10.0
libtpu: 0.0.40
codegen_flags: <defaults>
</compile_context>

<pallas_src>
import functools

import jax
import jax.numpy as jnp
from jax.experimental import pallas as pl
from jax.experimental.pallas import tpu as pltpu

TIME_STEPS_PER_DAY = 24
_LANE = 128
_SUBLANE = 8


def _round_up(x, m):
    return ((x + m - 1) // m) * m


def _baseline_kernel(x_ref, o_ref, *, n_zones):
    # x_ref block: (tb, TIME_STEPS_PER_DAY, n_feat)
    # o_ref block: (tb, n_zones)
    first_day = x_ref[:, :, :n_zones].astype(jnp.float32)    # (tb, 24, n_zones)
    day_sum = jnp.sum(first_day, axis=1)                      # (tb, n_zones)
    inv_steps = jnp.float32(1.0 / TIME_STEPS_PER_DAY)         # mul, not div
    o_ref[...] = (day_sum * inv_steps).astype(o_ref.dtype)


def _tensorcores_per_device():
    """Best-effort TensorCores-per-device: v7x -> 2, v5e/v6e -> 1."""
    try:
        kind = (getattr(jax.devices()[0], "device_kind", "") or "").lower()
    except Exception:
        return 1
    if "v7" in kind or "7x" in kind:
        return 2
    return 1


def _choose_tiling(b, n_feat, n_zones, itemsize, num_tc):
    # VMEM footprint of ONE buffered batch-row using lane/sublane-padded shapes
    # (n_feat ~ 12 still occupies full 128-lane rows in VMEM).
    padded_feat = _round_up(n_feat, _LANE)
    padded_zones = _round_up(n_zones, _LANE)
    row_bytes = (TIME_STEPS_PER_DAY * padded_feat + padded_zones) * itemsize

    # ~28 MiB double-buffered budget: fits the 32 MiB scoped default on
    # v6e/v7x and (with the explicit vmem_limit below) v5e too, with headroom
    # under v7x's 64 MiB physical VMEM.
    budget = 28 << 20
    tb_cap = max(_SUBLANE,
                 min(1024, (budget // (2 * row_bytes)) // _SUBLANE * _SUBLANE))

    if num_tc >= 2 and b > _SUBLANE:
        # v7x: even number of balanced tiles so ("parallel",) shards the grid
        # evenly across both TensorCores (avoids e.g. a 256/44 split).
        pairs = pl.cdiv(pl.cdiv(b, tb_cap), 2)
        n_tiles = 2 * pairs
        tb = _SUBLANE * pl.cdiv(pl.cdiv(b, n_tiles), _SUBLANE)
    elif b <= tb_cap:
        # Single-TC chips: one full-extent block; no forced 2-way split
        # (grid is just a serial loop there).
        tb = b
    else:
        tb = tb_cap

    grid = (pl.cdiv(b, tb),)

    # Explicit scoped-VMEM limit so large tiles don't trip v5e's 16 MiB
    # default; capped well under every generation's physical VMEM.
    working_set = 2 * tb * row_bytes
    vmem_limit = int(min(48 << 20, max(16 << 20, working_set + (4 << 20))))
    return tb, grid, vmem_limit


def baseline_predictor(past_tload_weather, n_zones, output_window,
                       future_weather=None):
    """Pallas equivalent of BaselinePredictor.forward.

    past_tload_weather: (B, input_seq_len, n_zones + n_weather_features)
    future_weather:     ignored (kept for API parity with the PyTorch module)
    returns:            (B, output_window, n_zones)
    """
    del future_weather  # not used by the baseline
    b, t_in, n_feat = past_tload_weather.shape
    assert t_in >= TIME_STEPS_PER_DAY, "need at least one day of history"
    assert n_feat >= n_zones

    in_dt = jnp.dtype(past_tload_weather.dtype)
    tb, grid, vmem_limit = _choose_tiling(
        b, n_feat, n_zones, in_dt.itemsize, _tensorcores_per_device())

    kernel = functools.partial(_baseline_kernel, n_zones=n_zones)

    cost = pl.CostEstimate(
        flops=b * TIME_STEPS_PER_DAY * n_zones + b * n_zones,
        transcendentals=0,
        bytes_accessed=(b * TIME_STEPS_PER_DAY * n_feat + b * n_zones)
        * in_dt.itemsize,
    )

    day_mean = pl.pallas_call(
        kernel,
        out_shape=jax.ShapeDtypeStruct((b, n_zones), past_tload_weather.dtype),
        grid=grid,
        in_specs=[
            # Only the first day of history is ever DMA'd:
            #   time block = 24 (multiple of 8), feature block = full extent.
            pl.BlockSpec((tb, TIME_STEPS_PER_DAY, n_feat), lambda i: (i, 0, 0)),
        ],
        out_specs=pl.BlockSpec((tb, n_zones), lambda i: (i, 0)),
        compiler_params=pltpu.CompilerParams(
            dimension_semantics=("parallel",),
            vmem_limit_bytes=vmem_limit,
        ),
        cost_estimate=cost,
    )(past_tload_weather)

    # The output_window repeat is pure broadcast; do it lazily in the wrapper
    # instead of writing output_window x redundant bytes from the kernel.
    return jnp.broadcast_to(
        day_mean[:, None, :], (b, output_window, n_zones)
    )


def _reference(past_tload_weather, n_zones, output_window):
    b = past_tload_weather.shape[0]
    ref = jnp.mean(
        past_tload_weather[:, :TIME_STEPS_PER_DAY, :n_zones], axis=1,
        keepdims=True)
    return jnp.broadcast_to(ref, (b, output_window, n_zones))


if __name__ == "__main__":
    input_seq_len = 48          # >= 24 timesteps of history
    n_zones = 8
    n_weather_features = 4
    output_window = 16

    key = jax.random.PRNGKey(0)
    k1, k2, k3 = jax.random.split(key, 3)

    # Small primary shape consistent with the module's forward contract.
    batch = 2
    past_tload_weather = jax.random.normal(
        k1, (batch, input_seq_len, n_zones + n_weather_features),
        dtype=jnp.float32)
    future_weather = jax.random.normal(
        k2, (batch, output_window, n_weather_features), dtype=jnp.float32)

    out = baseline_predictor(
        past_tload_weather, n_zones, output_window, future_weather)
    out = jax.block_until_ready(out)
    ref = _reference(past_tload_weather, n_zones, output_window)
    assert out.shape == (batch, output_window, n_zones)
    assert jnp.allclose(out, ref, atol=1e-5, rtol=1e-5)

    # Second (still small) batch that exercises the tiled / padded-tail path
    # on multi-TensorCore targets.
    batch2 = 20
    x2 = jax.random.normal(
        k3, (batch2, input_seq_len, n_zones + n_weather_features),
        dtype=jnp.float32)
    out2 = jax.block_until_ready(
        baseline_predictor(x2, n_zones, output_window))
    ref2 = _reference(x2, n_zones, output_window)
    assert out2.shape == (batch2, output_window, n_zones)
    assert jnp.allclose(out2, ref2, atol=1e-5, rtol=1e-5)

    print("KERNEL_OK")
</pallas_src>

<mosaic_0001>
module attributes {stable_mosaic.version = 11 : i64} {
  func.func @_baseline_kernel(%arg0: i32, %arg1: memref<2x24x12xf32, #tpu.memory_space<vmem>>, %arg2: memref<2x8xf32, #tpu.memory_space<vmem>>) attributes {dimension_semantics = [#tpu.dimension_semantics<parallel>], iteration_bounds = array<i64: 1>, scalar_prefetch = 0 : i64, scratch_operands = 0 : i64, tpu.core_type = #tpu.core_type<tc>, window_params = [{transform_indices = @transform_0, window_bounds = array<i64: 2, 24, 12>}, {transform_indices = @transform_1, window_bounds = array<i64: 2, 8>}]} {
    %c0 = arith.constant 0 : index
    %c0_0 = arith.constant 0 : index
    %c0_1 = arith.constant 0 : index
    %0 = vector.load %arg1[%c0, %c0_0, %c0_1] : memref<2x24x12xf32, #tpu.memory_space<vmem>>, vector<2x24x8xf32>
    %cst = arith.constant dense<0.000000e+00> : vector<2x8xf32>
    %1 = vector.multi_reduction <add>, %0, %cst [1] : vector<2x24x8xf32> to vector<2x8xf32>
    %cst_2 = arith.constant 0.0416666679 : f32
    %2 = vector.broadcast %cst_2 : f32 to vector<2x8xf32>
    %3 = arith.mulf %1, %2 : vector<2x8xf32>
    %c0_3 = arith.constant 0 : index
    %c0_4 = arith.constant 0 : index
    %4 = vector.load %arg2[%c0_3, %c0_4] : memref<2x8xf32, #tpu.memory_space<vmem>>, vector<2x8xf32>
    tpu.vector_store %arg2[%c0_3, %c0_4], %3 {strides = array<i32>} : memref<2x8xf32, #tpu.memory_space<vmem>>, vector<2x8xf32>,
    return
  }
  func.func @transform_0(%arg0: i32) -> (i32, i32, i32) {
    %c0_i32 = arith.constant 0 : i32
    %c0_i32_0 = arith.constant 0 : i32
    %c0_i32_1 = arith.constant 0 : i32
    return %arg0, %c0_i32, %c0_i32_0 : i32, i32, i32
  }
  func.func @transform_1(%arg0: i32) -> (i32, i32) {
    %c0_i32 = arith.constant 0 : i32
    %c0_i32_0 = arith.constant 0 : i32
    return %arg0, %c0_i32 : i32, i32
  }
}

</mosaic_0001>

<llo_original>
// kernel: tpu_custom_call.1
$region0: #{tpu_custom_call.1}
  #allocation0 [shape = 'u32[]', space=smem, size = 0x4, offset = 0x4, fixed_abs, tag = 'smem constant byte address 0x4 - core index']
  #allocation1 [shape = 'u32[72,128]{1,0:T(1,128)}', space=vmem, size = 0x9000, scoped, tag = 'internal scratch']
  %s0 = inlined_call_operand.vmem [shape: f32[2,48,12], index: 0, kind: input, shape index: {}]
  %s1 = inlined_call_operand.hbm [shape: f32[2,8], index: 1, kind: output, shape index: {}]
  %s2 = sld [smem:[#allocation0]]
  $region52: #{tpu_custom_call.1} parent=0
    _
  %s4 = ssub.s32 1, %s2
  %s5 = scalar_select 0, %s4, %s2
  $region1: #{tpu_custom_call.1} parent=0
    #allocation2 [shape = 'u8[24576]{0}', space=vmem, size = 0x6000, scoped, tag = 'input window, operand 0, single buffered']
    #allocation3 [shape = 'u8[1024]{0}', space=vmem, size = 0x400, scoped, tag = 'output window, operand 0, single buffered']
    #allocation4 [shape = 's32[1]{0}', space=sflag, size = 0x4, scoped, tag = 'scoped memory for tpu_custom_call.1']
    %6 = vsyncpa [#allocation4], 0
    // Predicated region
    $region2: #{tpu_custom_call.1} parent=1 // pred_check
      _
    $region3: #{tpu_custom_call.1} parent=1 // pred_check_branch
      %8 = sbr.rel (0) target = $region5
    $region4: #{tpu_custom_call.1} parent=1 // pred_region
      // Predicated region
      $region6: #{tpu_custom_call.1} parent=4 // pred_check
        _
      $region7: #{tpu_custom_call.1} parent=4 // pred_check_branch
        %10 = sbr.rel (0) target = $region9
      $region8: #{tpu_custom_call.1} parent=4 // pred_region
        // Predicated region
        $region10: #{tpu_custom_call.1} parent=8 // pred_check
          _
        $region11: #{tpu_custom_call.1} parent=8 // pred_check_branch
          %12 = sbr.rel (0) target = $region13
        $region12: #{tpu_custom_call.1} parent=8 // pred_region
          // Predicated region
          $region25: #{tpu_custom_call.1} parent=12 // pred_check
            _
          $region26: #{tpu_custom_call.1} parent=12 // pred_check_branch
            %38 = sbr.rel (0) target = $region28
          $region27: #{tpu_custom_call.1} parent=12 // pred_region
            loop: start=0, step=1, limit=1
            $region29: #{tpu_custom_call.1} parent=27 // loop_pre_header
              _
            $region30: #{tpu_custom_call.1} parent=27 // loop_header
              %s40 = sphi 0, %s44
              %p41 = scmp.ge.s32.totalorder %s40, 1
              %s45 = sphi %s0, %s0
              %s46 = sphi [#allocation2], [#allocation2]
            $region31: #{tpu_custom_call.1} parent=27 // loop_header_branch
              %43 = sbr.rel (%p41) target = $region35
            $region32: #{tpu_custom_call.1} parent=27 // loop_body
              %v47 = vld [vmem:[%s45] sm:$0xff]
              %48 = vst [vmem:[%s46] sm:$0xff] %v47
              %v49 = vld [vmem:[%s45 + $0x8] sm:$0xff]
              %50 = vst [vmem:[%s46 + $0x8] sm:$0xff] %v49
              %v51 = vld [vmem:[%s45 + $0x10] sm:$0xff]
              %52 = vst [vmem:[%s46 + $0x10] sm:$0xff] %v51
              %v53 = vld [vmem:[%s45 + $0x30] sm:$0xff]
              %54 = vst [vmem:[%s46 + $0x18] sm:$0xff] %v53
              %v55 = vld [vmem:[%s45 + $0x38] sm:$0xff]
              %56 = vst [vmem:[%s46 + $0x20] sm:$0xff] %v55
              %v57 = vld [vmem:[%s45 + $0x40] sm:$0xff]
              %58 = vst [vmem:[%s46 + $0x28] sm:$0xff] %v57
            $region33: #{tpu_custom_call.1} parent=27 // loop_footer
              %s44 = sadd.s32 1, %s40
            $region34: #{tpu_custom_call.1} parent=27 // loop_footer_branch
              %39 = sbr.rel target = $region30
            $region35: #{tpu_custom_call.1} parent=27 // loop_exit
              _
          $region28: #{tpu_custom_call.1} parent=12 // pred_fallthru
            _
          // Predicated region
          $region36: #{tpu_custom_call.1} parent=12 // pred_check
            _
          $region37: #{tpu_custom_call.1} parent=12 // pred_check_branch
            %60 = sbr.rel target = $region39
          $region38: #{tpu_custom_call.1} parent=12 // pred_region
            _
          $region39: #{tpu_custom_call.1} parent=12 // pred_fallthru
            _
        $region13: #{tpu_custom_call.1} parent=8 // pred_fallthru
          _
        // Predicated region
        $region14: #{tpu_custom_call.1} parent=8 // pred_check
          _
        $region15: #{tpu_custom_call.1} parent=8 // pred_check_branch
          %14 = sbr.rel target = $region17
        $region16: #{tpu_custom_call.1} parent=8 // pred_region
          %s16 = ssub.s32 256, 1
          loop: start=0, step=1, limit=1
          $region18: #{tpu_custom_call.1} parent=16 // loop_pre_header
            _
          $region19: #{tpu_custom_call.1} parent=16 // loop_header
            %s18 = sphi 0, %s22
            %p19 = scmp.ge.s32.totalorder %s18, 1
            %s23 = sphi %s0, %s0
            %s24 = sphi [#allocation2], [#allocation2]
          $region20: #{tpu_custom_call.1} parent=16 // loop_header_branch
            %21 = sbr.rel (%p19) target = $region24
          $region21: #{tpu_custom_call.1} parent=16 // loop_body
            %v25 = vld [vmem:[%s23] sm:%s16]
            %26 = vst [vmem:[%s24] sm:%s16] %v25
            %v27 = vld [vmem:[%s23 + $0x8] sm:%s16]
            %28 = vst [vmem:[%s24 + $0x8] sm:%s16] %v27
            %v29 = vld [vmem:[%s23 + $0x10] sm:%s16]
            %30 = vst [vmem:[%s24 + $0x10] sm:%s16] %v29
            %v31 = vld [vmem:[%s23 + $0x30] sm:%s16]
            %32 = vst [vmem:[%s24 + $0x18] sm:%s16] %v31
            %v33 = vld [vmem:[%s23 + $0x38] sm:%s16]
            %34 = vst [vmem:[%s24 + $0x20] sm:%s16] %v33
            %v35 = vld [vmem:[%s23 + $0x40] sm:%s16]
            %36 = vst [vmem:[%s24 + $0x28] sm:%s16] %v35
          $region22: #{tpu_custom_call.1} parent=16 // loop_footer
            %s22 = sadd.s32 1, %s18
          $region23: #{tpu_custom_call.1} parent=16 // loop_footer_branch
            %17 = sbr.rel target = $region19
          $region24: #{tpu_custom_call.1} parent=16 // loop_exit
            _
        $region17: #{tpu_custom_call.1} parent=8 // pred_fallthru
          _
      $region9: #{tpu_custom_call.1} parent=4 // pred_fallthru
        _
      %61 = vnop
    $region5: #{tpu_custom_call.1} parent=1 // pred_fallthru
      _
    // Predicated region
    $region40: #{tpu_custom_call.1} parent=1 // pred_check
      _
    $region41: #{tpu_custom_call.1} parent=1 // pred_check_branch
      %63 = sbr.rel (0) target = $region43
    $region42: #{tpu_custom_call.1} parent=1 // pred_region
      _
    $region43: #{tpu_custom_call.1} parent=1 // pred_fallthru
      _
    %v64 = vld [vmem:[#allocation2] sm:$0xff]
    %v65 = vld [vmem:[#allocation2 + $0x8] sm:$0xff]
    %v66 = vld [vmem:[#allocation2 + $0x10] sm:$0xff]
    %v67 = vld [vmem:[#allocation2 + $0x18] sm:$0xff]
    %v68 = vld [vmem:[#allocation2 + $0x20] sm:$0xff]
    %v69 = vld [vmem:[#allocation2 + $0x28] sm:$0xff]
    %vm70 = vcmask 64512
    %v71 = vsel %vm70, %v64, 0.0
    %v72 = vsel %vm70, %v65, 0.0
    %v73 = vadd.f32 %v71, %v72
    %v74 = vsel %vm70, %v66, 0.0
    %v75 = vadd.f32 %v73, %v74
    %v76 = vrot.slane %v75, 4
    %v77 = vadd.f32 %v75, %v76
    %v78 = vrot.slane %v77, 2
    %v79 = vadd.f32 %v77, %v78
    %v80 = vrot.slane %v79, 1
    %v81 = vadd.f32 %v79, %v80
    %v82 = vsel %vm70, %v67, 0.0
    %v83 = vsel %vm70, %v68, 0.0
    %v84 = vadd.f32 %v82, %v83
    %v85 = vsel %vm70, %v69, 0.0
    %v86 = vadd.f32 %v84, %v85
    %v87 = vrot.slane %v86, 4
    %v88 = vadd.f32 %v86, %v87
    %v89 = vrot.slane %v88, 2
    %v90 = vadd.f32 %v88, %v89
    %v91 = vrot.slane %v90, 1
    %v92 = vadd.f32 %v90, %v91
    %v93 = vmul.f32 %v81, 0.041666668
    %v94 = vmul.f32 %v92, 0.041666668
    %vm97 = vcmask 1041409
    %v98 = vsel %vm97, %v94, %v93
    %vm100 = vcmask 58368
    %101 = vst.msk [vmem:[#allocation3] sm:$0x3] %vm100, %v98
    // Predicated region
    $region44: #{tpu_custom_call.1} parent=1 // pred_check
      _
    $region45: #{tpu_custom_call.1} parent=1 // pred_check_branch
      %103 = sbr.rel (0) target = $region47
    $region46: #{tpu_custom_call.1} parent=1 // pred_region
      %105 = vsyncadd [#allocation4], 0
      %s107 = sshll.u32 [#allocation3], 4
      %s108 = int_to_ptr.vmem [resolvable:$true] %s107
      %s109 = sshll.u32 %s1, 4
      %s110 = int_to_ptr.hbm [resolvable:$true] %s109
      %112 = dma.vmem_to_hbm [thread:$0]  %s108, 32, %s110, [#allocation4]
    $region47: #{tpu_custom_call.1} parent=1 // pred_fallthru
      _
    // Predicated region
    $region48: #{tpu_custom_call.1} parent=1 // pred_check
      _
    $region49: #{tpu_custom_call.1} parent=1 // pred_check_branch
      %114 = sbr.rel (0) target = $region51
    $region50: #{tpu_custom_call.1} parent=1 // pred_region
      %116 = dma.done [#allocation4], 32
    $region51: #{tpu_custom_call.1} parent=1 // pred_fallthru
      _
    %117 = vsyncpa [#allocation4], 1

</llo_original>
